<compile_context>
chip_gen: v6e
topology: v6e:2x2x1
jax: 0.10.0
libtpu: 0.0.40
codegen_flags: <defaults>
</compile_context>

<pallas_src>
import functools

import jax
import jax.numpy as jnp
from jax.experimental import pallas as pl
from jax.experimental.pallas import tpu as pltpu


def _nrd_kernel(pred_ref, y_ref, pixw_ref, num_ref, den_ref, *,
                softmax, gamma, total_m, needs_mask):
    j = pl.program_id(1)
    tile_m = pred_ref.shape[-1]

    @pl.when(j == 0)
    def _():
        num_ref[...] = jnp.zeros_like(num_ref)
        den_ref[...] = jnp.zeros_like(den_ref)

    p = pred_ref[...].astype(jnp.float32)      # (C, TM)
    y = y_ref[...].astype(jnp.float32)         # (C, TM)
    w = pixw_ref[...].astype(jnp.float32)      # (1, TM) -> broadcasts over C

    if needs_mask:
        # Ragged tail: out-of-bounds lanes of the last tile may contain garbage.
        # Use jnp.where (not multiply-by-0) so NaN garbage cannot leak into sums.
        col = j * tile_m + jax.lax.broadcasted_iota(jnp.int32, (1, tile_m), 1)
        valid = col < total_m                  # (1, TM) bool
        p = jnp.where(valid, p, 0.0)
        y = jnp.where(valid, y, 0.0)
        w = jnp.where(valid, w, 0.0)

    if softmax:
        # softmax over the class (sublane) axis, matching nn.Softmax(dim=1);
        # one reciprocal per column instead of C divides.
        m = jnp.max(p, axis=0, keepdims=True)
        e = jnp.exp(p - m)
        s = jnp.sum(e, axis=0, keepdims=True)
        p = e * (1.0 / s)

    d = jnp.abs(p - y)
    if gamma == 1.5:
        powd = d * jnp.sqrt(d)                 # exact |d|^1.5, EUP-friendly
    else:
        powd = jnp.where(d > 0.0,
                         jnp.exp(gamma * jnp.log(jnp.maximum(d, 1e-30))),
                         0.0)
    num = powd * w
    den = (p + y) * w

    num_ref[...] += jnp.sum(num, axis=1, keepdims=True)   # (C, 1)
    den_ref[...] += jnp.sum(den, axis=1, keepdims=True)   # (C, 1)


def _choose_tile_m(C, HW, tile_m):
    """Multiple of 128, capped by a VMEM budget and the (rounded-up) problem size."""
    tile_m = max(128, (int(tile_m) // 128) * 128)
    # pipelined (double-buffered) f32 input buffers: 2 * (C + C + 1) rows * tile_m * 4B
    budget = 8 * 1024 * 1024
    per_col = (2 * C + 1) * 4 * 2
    max_tile = max(128, (budget // per_col) // 128 * 128)
    hw_round = ((HW + 127) // 128) * 128
    return min(tile_m, max_tile, hw_round)


def noise_robust_dice_loss(predict, soft_y, pix_w, cls_w,
                           softmax=True, gamma=1.5, tile_m=8192):
    """predict/soft_y: (N, C, H, W); pix_w: (N, 1, H, W); cls_w: (C,)."""
    N, C, H, W = predict.shape
    HW = H * W

    # contiguous reshapes only -- no transpose / pad / cast HBM round-trips
    p3 = predict.reshape(N, C, HW)
    y3 = soft_y.reshape(N, C, HW)
    w3 = pix_w.reshape(N, 1, HW)

    tile_m = _choose_tile_m(C, HW, tile_m)
    num_tiles = (HW + tile_m - 1) // tile_m
    needs_mask = (HW % tile_m) != 0

    kernel = functools.partial(
        _nrd_kernel, softmax=bool(softmax), gamma=float(gamma),
        total_m=HW, needs_mask=needs_mask)

    num_part, den_part = pl.pallas_call(
        kernel,
        out_shape=(jax.ShapeDtypeStruct((N, C, 1), jnp.float32),
                   jax.ShapeDtypeStruct((N, C, 1), jnp.float32)),
        grid_spec=pltpu.PrefetchScalarGridSpec(
            num_scalar_prefetch=0,
            grid=(N, num_tiles),
            in_specs=[
                pl.BlockSpec((pl.Squeezed(), C, tile_m), lambda n, j: (n, 0, j)),
                pl.BlockSpec((pl.Squeezed(), C, tile_m), lambda n, j: (n, 0, j)),
                pl.BlockSpec((pl.Squeezed(), 1, tile_m), lambda n, j: (n, 0, j)),
            ],
            out_specs=(
                pl.BlockSpec((pl.Squeezed(), C, 1), lambda n, j: (n, 0, 0)),
                pl.BlockSpec((pl.Squeezed(), C, 1), lambda n, j: (n, 0, 0)),
            ),
        ),
        compiler_params=pltpu.CompilerParams(
            dimension_semantics=("parallel", "arbitrary"),
            vmem_limit_bytes=32 * 1024 * 1024),
    )(p3, y3, w3)

    # Cheap class-weighted reduction in the wrapper (per review: keep the kernel
    # emitting per-class partial sums so it stays splittable across cores).
    num_sum = jnp.sum(num_part, axis=0)[:, 0]          # (C,)
    den_sum = jnp.sum(den_part, axis=0)[:, 0]          # (C,)
    cls_w = cls_w.astype(jnp.float32)
    loss_vec = num_sum / (den_sum + 1e-5)
    return jnp.sum(loss_vec * cls_w) / jnp.sum(cls_w)


def reference_loss(predict, soft_y, pix_w, cls_w, softmax=True, gamma=1.5):
    """Pure-JAX transcription of the PyTorch forward (for verification)."""
    if softmax:
        predict = jax.nn.softmax(predict, axis=1)

    def to2d(x):  # reshape_tensor_to_2D
        return jnp.transpose(x, (0, 2, 3, 1)).reshape(-1, x.shape[1])

    p = to2d(predict)
    y = to2d(soft_y)
    w = to2d(pix_w)
    num = jnp.power(jnp.abs(p - y), gamma) * w
    den = (p + y) * w
    loss_vec = num.sum(0) / (den.sum(0) + 1e-5)
    return (loss_vec * cls_w).sum() / cls_w.sum()


def _make_inputs(key, N, C, H, W):
    k1, k2, k3, k4 = jax.random.split(key, 4)
    prediction = jax.random.normal(k1, (N, C, H, W), dtype=jnp.float32)   # logits
    labels = jax.random.randint(k2, (N, H, W), 0, C)
    ground_truth = jnp.transpose(
        jax.nn.one_hot(labels, C, dtype=jnp.float32), (0, 3, 1, 2))       # (N,C,H,W)
    pixel_weight = jax.random.uniform(
        k3, (N, 1, H, W), dtype=jnp.float32, minval=0.5, maxval=1.5)
    class_weight = jax.random.uniform(
        k4, (C,), dtype=jnp.float32, minval=0.5, maxval=1.5)
    return prediction, ground_truth, pixel_weight, class_weight


if __name__ == "__main__":
    key = jax.random.PRNGKey(0)
    k_a, k_b = jax.random.split(key)

    # Case 1: HW is a multiple of 128 (no tail mask path).
    pr, gt, pw, cw = _make_inputs(k_a, N=2, C=4, H=16, W=16)
    loss = jax.block_until_ready(
        noise_robust_dice_loss(pr, gt, pw, cw, softmax=True))
    ref = jax.block_until_ready(
        reference_loss(pr, gt, pw, cw, softmax=True))
    assert jnp.allclose(loss, ref, rtol=1e-5, atol=1e-6), (loss, ref)

    # Case 2: ragged HW (15*15 = 225) exercises the in-kernel tail mask.
    pr2, gt2, pw2, cw2 = _make_inputs(k_b, N=2, C=4, H=15, W=15)
    loss2 = jax.block_until_ready(
        noise_robust_dice_loss(pr2, gt2, pw2, cw2, softmax=True))
    ref2 = jax.block_until_ready(
        reference_loss(pr2, gt2, pw2, cw2, softmax=True))
    assert jnp.allclose(loss2, ref2, rtol=1e-5, atol=1e-6), (loss2, ref2)

    print("KERNEL_OK")
</pallas_src>

<mosaic_0001>
module attributes {stable_mosaic.version = 11 : i64} {
  func.func @_nrd_kernel(%arg0: i32, %arg1: i32, %arg2: memref<1x4x256xf32, #tpu.memory_space<vmem>>, %arg3: memref<1x4x256xf32, #tpu.memory_space<vmem>>, %arg4: memref<1x1x256xf32, #tpu.memory_space<vmem>>, %arg5: memref<1x4x1xf32, #tpu.memory_space<vmem>>, %arg6: memref<1x4x1xf32, #tpu.memory_space<vmem>>) attributes {dimension_semantics = [#tpu.dimension_semantics<parallel>, #tpu.dimension_semantics<arbitrary>], iteration_bounds = array<i64: 2, 1>, scalar_prefetch = 0 : i64, scratch_operands = 0 : i64, tpu.core_type = #tpu.core_type<tc>, window_params = [{transform_indices = @transform_0, window_bounds = array<i64: 1, 4, 256>}, {transform_indices = @transform_1, window_bounds = array<i64: 1, 4, 256>}, {transform_indices = @transform_2, window_bounds = array<i64: 1, 1, 256>}, {transform_indices = @transform_3, window_bounds = array<i64: 1, 4, 1>}, {transform_indices = @transform_4, window_bounds = array<i64: 1, 4, 1>}]} {
    %c0_i32 = arith.constant 0 : i32
    %0 = arith.cmpi eq, %arg1, %c0_i32 : i32
    %1 = arith.extui %0 : i1 to i32
    %c0_i32_0 = arith.constant 0 : i32
    %2 = arith.cmpi ne, %1, %c0_i32_0 : i32
    scf.if %2 {
      %cst_25 = arith.constant 0.000000e+00 : f32
      %45 = vector.broadcast %cst_25 : f32 to vector<4x1xf32>
      %c0_26 = arith.constant 0 : index
      %c0_27 = arith.constant 0 : index
      %c0_28 = arith.constant 0 : index
      %46 = vector.load %arg5[%c0_26, %c0_27, %c0_28] : memref<1x4x1xf32, #tpu.memory_space<vmem>>, vector<1x4x1xf32>
      %47 = vector.shape_cast %46 : vector<1x4x1xf32> to vector<4x1xf32>
      %48 = vector.shape_cast %45 : vector<4x1xf32> to vector<1x4x1xf32>
      tpu.vector_store %arg5[%c0_26, %c0_27, %c0_28], %48 {strides = array<i32>} : memref<1x4x1xf32, #tpu.memory_space<vmem>>, vector<1x4x1xf32>,
      %cst_29 = arith.constant 0.000000e+00 : f32
      %49 = vector.broadcast %cst_29 : f32 to vector<4x1xf32>
      %c0_30 = arith.constant 0 : index
      %c0_31 = arith.constant 0 : index
      %c0_32 = arith.constant 0 : index
      %50 = vector.load %arg6[%c0_30, %c0_31, %c0_32] : memref<1x4x1xf32, #tpu.memory_space<vmem>>, vector<1x4x1xf32>
      %51 = vector.shape_cast %50 : vector<1x4x1xf32> to vector<4x1xf32>
      %52 = vector.shape_cast %49 : vector<4x1xf32> to vector<1x4x1xf32>
      tpu.vector_store %arg6[%c0_30, %c0_31, %c0_32], %52 {strides = array<i32>} : memref<1x4x1xf32, #tpu.memory_space<vmem>>, vector<1x4x1xf32>,
    } else {
    }
    %c0 = arith.constant 0 : index
    %c0_1 = arith.constant 0 : index
    %c0_2 = arith.constant 0 : index
    %3 = vector.load %arg2[%c0, %c0_1, %c0_2] : memref<1x4x256xf32, #tpu.memory_space<vmem>>, vector<1x4x256xf32>
    %4 = vector.shape_cast %3 : vector<1x4x256xf32> to vector<4x256xf32>
    %c0_3 = arith.constant 0 : index
    %c0_4 = arith.constant 0 : index
    %c0_5 = arith.constant 0 : index
    %5 = vector.load %arg3[%c0_3, %c0_4, %c0_5] : memref<1x4x256xf32, #tpu.memory_space<vmem>>, vector<1x4x256xf32>
    %6 = vector.shape_cast %5 : vector<1x4x256xf32> to vector<4x256xf32>
    %c0_6 = arith.constant 0 : index
    %c0_7 = arith.constant 0 : index
    %c0_8 = arith.constant 0 : index
    %7 = vector.load %arg4[%c0_6, %c0_7, %c0_8] : memref<1x1x256xf32, #tpu.memory_space<vmem>>, vector<1x1x256xf32>
    %8 = vector.shape_cast %7 : vector<1x1x256xf32> to vector<1x256xf32>
    %cst = arith.constant dense<0xFF800000> : vector<256xf32>
    %9 = vector.multi_reduction <maximumf>, %4, %cst [0] : vector<4x256xf32> to vector<256xf32>
    %10 = vector.shape_cast %9 : vector<256xf32> to vector<1x256xf32>
    %11 = vector.broadcast %10 : vector<1x256xf32> to vector<4x256xf32>
    %12 = arith.subf %4, %11 : vector<4x256xf32>
    %13 = math.exp %12 : vector<4x256xf32>
    %cst_9 = arith.constant dense<0.000000e+00> : vector<256xf32>
    %14 = vector.multi_reduction <add>, %13, %cst_9 [0] : vector<4x256xf32> to vector<256xf32>
    %15 = vector.shape_cast %14 : vector<256xf32> to vector<1x256xf32>
    %cst_10 = arith.constant 1.000000e+00 : f32
    %16 = vector.broadcast %cst_10 : f32 to vector<1x256xf32>
    %17 = arith.divf %16, %15 : vector<1x256xf32>
    %18 = vector.broadcast %17 : vector<1x256xf32> to vector<4x256xf32>
    %19 = arith.mulf %13, %18 : vector<4x256xf32>
    %20 = arith.subf %19, %6 : vector<4x256xf32>
    %21 = math.absf %20 : vector<4x256xf32>
    %22 = math.sqrt %21 : vector<4x256xf32>
    %23 = arith.mulf %21, %22 : vector<4x256xf32>
    %24 = vector.broadcast %8 : vector<1x256xf32> to vector<4x256xf32>
    %25 = arith.mulf %23, %24 : vector<4x256xf32>
    %26 = arith.addf %19, %6 : vector<4x256xf32>
    %27 = vector.broadcast %8 : vector<1x256xf32> to vector<4x256xf32>
    %28 = arith.mulf %26, %27 : vector<4x256xf32>
    %c0_11 = arith.constant 0 : index
    %c0_12 = arith.constant 0 : index
    %c0_13 = arith.constant 0 : index
    %29 = vector.load %arg5[%c0_11, %c0_12, %c0_13] : memref<1x4x1xf32, #tpu.memory_space<vmem>>, vector<1x4x1xf32>
    %30 = vector.shape_cast %29 : vector<1x4x1xf32> to vector<4x1xf32>
    %cst_14 = arith.constant dense<0.000000e+00> : vector<4xf32>
    %31 = vector.multi_reduction <add>, %25, %cst_14 [1] : vector<4x256xf32> to vector<4xf32>
    %32 = vector.shape_cast %31 : vector<4xf32> to vector<4x1xf32>
    %33 = arith.addf %30, %32 : vector<4x1xf32>
    %c0_15 = arith.constant 0 : index
    %c0_16 = arith.constant 0 : index
    %c0_17 = arith.constant 0 : index
    %34 = vector.load %arg5[%c0_15, %c0_16, %c0_17] : memref<1x4x1xf32, #tpu.memory_space<vmem>>, vector<1x4x1xf32>
    %35 = vector.shape_cast %34 : vector<1x4x1xf32> to vector<4x1xf32>
    %36 = vector.shape_cast %33 : vector<4x1xf32> to vector<1x4x1xf32>
    tpu.vector_store %arg5[%c0_15, %c0_16, %c0_17], %36 {strides = array<i32>} : memref<1x4x1xf32, #tpu.memory_space<vmem>>, vector<1x4x1xf32>,
    %c0_18 = arith.constant 0 : index
    %c0_19 = arith.constant 0 : index
    %c0_20 = arith.constant 0 : index
    %37 = vector.load %arg6[%c0_18, %c0_19, %c0_20] : memref<1x4x1xf32, #tpu.memory_space<vmem>>, vector<1x4x1xf32>
    %38 = vector.shape_cast %37 : vector<1x4x1xf32> to vector<4x1xf32>
    %cst_21 = arith.constant dense<0.000000e+00> : vector<4xf32>
    %39 = vector.multi_reduction <add>, %28, %cst_21 [1] : vector<4x256xf32> to vector<4xf32>
    %40 = vector.shape_cast %39 : vector<4xf32> to vector<4x1xf32>
    %41 = arith.addf %38, %40 : vector<4x1xf32>
    %c0_22 = arith.constant 0 : index
    %c0_23 = arith.constant 0 : index
    %c0_24 = arith.constant 0 : index
    %42 = vector.load %arg6[%c0_22, %c0_23, %c0_24] : memref<1x4x1xf32, #tpu.memory_space<vmem>>, vector<1x4x1xf32>
    %43 = vector.shape_cast %42 : vector<1x4x1xf32> to vector<4x1xf32>
    %44 = vector.shape_cast %41 : vector<4x1xf32> to vector<1x4x1xf32>
    tpu.vector_store %arg6[%c0_22, %c0_23, %c0_24], %44 {strides = array<i32>} : memref<1x4x1xf32, #tpu.memory_space<vmem>>, vector<1x4x1xf32>,
    return
  }
  func.func @transform_0(%arg0: i32, %arg1: i32) -> (i32, i32, i32) {
    %c0_i32 = arith.constant 0 : i32
    %c0_i32_0 = arith.constant 0 : i32
    return %arg0, %c0_i32, %arg1 : i32, i32, i32
  }
  func.func @transform_1(%arg0: i32, %arg1: i32) -> (i32, i32, i32) {
    %c0_i32 = arith.constant 0 : i32
    %c0_i32_0 = arith.constant 0 : i32
    return %arg0, %c0_i32, %arg1 : i32, i32, i32
  }
  func.func @transform_2(%arg0: i32, %arg1: i32) -> (i32, i32, i32) {
    %c0_i32 = arith.constant 0 : i32
    %c0_i32_0 = arith.constant 0 : i32
    return %arg0, %c0_i32, %arg1 : i32, i32, i32
  }
  func.func @transform_3(%arg0: i32, %arg1: i32) -> (i32, i32, i32) {
    %c0_i32 = arith.constant 0 : i32
    %c0_i32_0 = arith.constant 0 : i32
    %c0_i32_1 = arith.constant 0 : i32
    return %arg0, %c0_i32, %c0_i32_0 : i32, i32, i32
  }
  func.func @transform_4(%arg0: i32, %arg1: i32) -> (i32, i32, i32) {
    %c0_i32 = arith.constant 0 : i32
    %c0_i32_0 = arith.constant 0 : i32
    %c0_i32_1 = arith.constant 0 : i32
    return %arg0, %c0_i32, %c0_i32_0 : i32, i32, i32
  }
}

</mosaic_0001>

<llo_original>
// kernel: tpu_custom_call.1
$region0: #{tpu_custom_call.1}
  #allocation0 [shape = 'u32[]', space=smem, size = 0x4, offset = 0x4, fixed_abs, tag = 'smem constant byte address 0x4 - core index']
  #allocation1 [shape = 'u32[144,128]{1,0:T(1,128)}', space=vmem, size = 0x12000, scoped, tag = 'internal scratch']
  %s0 = inlined_call_operand.hbm [shape: f32[2,4,256], index: 0, kind: input, shape index: {}]
  %s1 = inlined_call_operand.hbm [shape: f32[2,4,256], index: 1, kind: input, shape index: {}]
  %s2 = inlined_call_operand.hbm [shape: f32[2,1,256], index: 2, kind: input, shape index: {}]
  %s3 = inlined_call_operand.vmem [shape: f32[2,4,1], index: 3, kind: output, shape index: {0}]
  %s4 = inlined_call_operand.vmem [shape: f32[2,4,1], index: 4, kind: output, shape index: {1}]
  %5 = xla_tuple %s3, %s4
  %s6 = sld [smem:[#allocation0]]
  $region69: #{tpu_custom_call.1} parent=0
    _
  %s8 = ssub.s32 1, %s6
  %s9 = scalar_select 0, %s8, %s6
  $region1: #{tpu_custom_call.1} parent=0
    #allocation2 [shape = 'u8[8192]{0}', space=vmem, size = 0x2000, scoped, tag = 'input window, operand 0']
    #allocation3 [shape = 's32[2]{0}', space=sflag, size = 0x8, scoped, tag = 'scoped memory for tpu_custom_call.1']
    #allocation4 [shape = 'u8[8192]{0}', space=vmem, size = 0x2000, scoped, tag = 'input window, operand 1']
    #allocation5 [shape = 's32[2]{0}', space=sflag, size = 0x8, scoped, tag = 'scoped memory for tpu_custom_call.1']
    #allocation6 [shape = 'u8[2048]{0}', space=vmem, size = 0x800, scoped, tag = 'input window, operand 2']
    %10 = vsyncpa [#allocation3], 0
    %s11 = scalar_lea.sflag [#allocation3], 1
    %12 = vsyncpa %s11, 0
    %13 = vsyncpa [#allocation5], 0
    %s14 = scalar_lea.sflag [#allocation5], 1
    %15 = vsyncpa %s14, 0
    loop: start=0, step=1, limit=4
    $region2: #{tpu_custom_call.1} parent=1 // loop_pre_header
      _
    $region3: #{tpu_custom_call.1} parent=1 // loop_header
      %s17 = sphi 0, %s21
      %p18 = scmp.ge.s32.totalorder %s17, 4
      %s24 = sphi 0, %s36
      %s25 = sphi 0, %s32
      %s26 = sphi 0, %s24
      %s27 = sphi 0, %s25
      %s28 = sphi 0, %s26
      %s29 = sphi 0, %s27
      %s41 = sphi 0, %s43
      %s44 = sphi 0, %s41
      %s45 = sphi 0, %s44
      %s61 = sphi 0, %s45
      %s69 = sphi 0, %s71
      %s72 = sphi 0, %s69
      %s73 = sphi 0, %s72
      %s89 = sphi 0, %s73
      %s97 = sphi 0, %s99
      %s100 = sphi 0, %s97
      %s101 = sphi 0, %s100
      %s117 = sphi 0, %s101
      %s123 = sphi 0, %s125
      %s126 = sphi 0, %s123
      %s127 = sphi 0, %s126
      %s143 = sphi 0, %s127
      %s149 = sphi 0, %s151
      %s152 = sphi 0, %s149
      %s153 = sphi 0, %s152
      %s169 = sphi 0, %s153
    $region4: #{tpu_custom_call.1} parent=1 // loop_header_branch
      %20 = sbr.rel (%p18) target = $region8
    $region5: #{tpu_custom_call.1} parent=1 // loop_body
      %s22 = ssub.s32 %s17, 1
      %s23 = ssub.s32 %s17, 2
      %s30 = sadd.s32 1, %s25
      %p31 = scmp.ge.s32.totalorder %s30, 1
      %s32 = scalar_select %p31, 0, %s30
      %s33 = sadd.s32 1, %s24
      %s34 = scalar_select %p31, %s33, %s24
      %p35 = scmp.ge.s32.totalorder %s34, 2
      %s36 = scalar_select %p35, 0, %s34
      %s37 = ssub.s32 %s24, %s36
      %s38 = ssub.s32 %s25, %s32
      %s39 = sor.u32 %s37, %s38
      %p40 = scmp.eq.s32.totalorder %s39, 0
      %s42 = sadd.s32 %s41, 1
      %s43 = scalar_select %p40, %s41, %s42
      %p46 = pneg %p40
      %p47 = scmp.eq.s32.totalorder %s17, 1
      %p48 = por %p46, %p47
      %p49 = scmp.ne.s32.totalorder %s41, %s44
      %p50 = scmp.eq.s32.totalorder %s17, 0
      %p51 = por %p49, %p50
      %p52 = scmp.ne.s32.totalorder %s41, %s44
      %p53 = scmp.eq.s32.totalorder %s22, 1
      %p54 = por %p52, %p53
      %p55 = scmp.ne.s32.totalorder %s44, %s45
      %p56 = scmp.eq.s32.totalorder %s22, 0
      %p57 = por %p55, %p56
      %p58 = scmp.ne.s32.totalorder %s44, %s45
      %p59 = scmp.eq.s32.totalorder %s23, 1
      %p60 = por %p58, %p59
      %p62 = scmp.ne.s32.totalorder %s45, %s61
      %p63 = scmp.eq.s32.totalorder %s23, 0
      %p64 = por %p62, %p63
      %s65 = ssub.s32 %s24, %s36
      %s66 = ssub.s32 %s25, %s32
      %s67 = sor.u32 %s65, %s66
      %p68 = scmp.eq.s32.totalorder %s67, 0
      %s70 = sadd.s32 %s69, 1
      %s71 = scalar_select %p68, %s69, %s70
      %p74 = pneg %p68
      %p75 = scmp.eq.s32.totalorder %s17, 1
      %p76 = por %p74, %p75
      %p77 = scmp.ne.s32.totalorder %s69, %s72
      %p78 = scmp.eq.s32.totalorder %s17, 0
      %p79 = por %p77, %p78
      %p80 = scmp.ne.s32.totalorder %s69, %s72
      %p81 = scmp.eq.s32.totalorder %s22, 1
      %p82 = por %p80, %p81
      %p83 = scmp.ne.s32.totalorder %s72, %s73
      %p84 = scmp.eq.s32.totalorder %s22, 0
      %p85 = por %p83, %p84
      %p86 = scmp.ne.s32.totalorder %s72, %s73
      %p87 = scmp.eq.s32.totalorder %s23, 1
      %p88 = por %p86, %p87
      %p90 = scmp.ne.s32.totalorder %s73, %s89
      %p91 = scmp.eq.s32.totalorder %s23, 0
      %p92 = por %p90, %p91
      %s93 = ssub.s32 %s24, %s36
      %s94 = ssub.s32 %s25, %s32
      %s95 = sor.u32 %s93, %s94
      %p96 = scmp.eq.s32.totalorder %s95, 0
      %s98 = sadd.s32 %s97, 1
      %s99 = scalar_select %p96, %s97, %s98
      %p102 = pneg %p96
      %p103 = scmp.eq.s32.totalorder %s17, 1
      %p104 = por %p102, %p103
      %p105 = scmp.ne.s32.totalorder %s97, %s100
      %p106 = scmp.eq.s32.totalorder %s17, 0
      %p107 = por %p105, %p106
      %p108 = scmp.ne.s32.totalorder %s97, %s100
      %p109 = scmp.eq.s32.totalorder %s22, 1
      %p110 = por %p108, %p109
      %p111 = scmp.ne.s32.totalorder %s100, %s101
      %p112 = scmp.eq.s32.totalorder %s22, 0
      %p113 = por %p111, %p112
      %p114 = scmp.ne.s32.totalorder %s100, %s101
      %p115 = scmp.eq.s32.totalorder %s23, 1
      %p116 = por %p114, %p115
      %p118 = scmp.ne.s32.totalorder %s101, %s117
      %p119 = scmp.eq.s32.totalorder %s23, 0
      %p120 = por %p118, %p119
      %s121 = ssub.s32 %s24, %s36
      %p122 = scmp.eq.s32.totalorder %s121, 0
      %s124 = sadd.s32 %s123, 1
      %s125 = scalar_select %p122, %s123, %s124
      %p128 = pneg %p122
      %p129 = scmp.eq.s32.totalorder %s17, 1
      %p130 = por %p128, %p129
      %p131 = scmp.ne.s32.totalorder %s123, %s126
      %p132 = scmp.eq.s32.totalorder %s17, 0
      %p133 = por %p131, %p132
      %p134 = scmp.ne.s32.totalorder %s123, %s126
      %p135 = scmp.eq.s32.totalorder %s22, 1
      %p136 = por %p134, %p135
      %p137 = scmp.ne.s32.totalorder %s126, %s127
      %p138 = scmp.eq.s32.totalorder %s22, 0
      %p139 = por %p137, %p138
      %p140 = scmp.ne.s32.totalorder %s126, %s127
      %p141 = scmp.eq.s32.totalorder %s23, 1
      %p142 = por %p140, %p141
      %p144 = scmp.ne.s32.totalorder %s127, %s143
      %p145 = scmp.eq.s32.totalorder %s23, 0
      %p146 = por %p144, %p145
      %s147 = ssub.s32 %s24, %s36
      %p148 = scmp.eq.s32.totalorder %s147, 0
      %s150 = sadd.s32 %s149, 1
      %s151 = scalar_select %p148, %s149, %s150
      %p154 = pneg %p148
      %p155 = scmp.eq.s32.totalorder %s17, 1
      %p156 = por %p154, %p155
      %p157 = scmp.ne.s32.totalorder %s149, %s152
      %p158 = scmp.eq.s32.totalorder %s17, 0
      %p159 = por %p157, %p158
      %p160 = scmp.ne.s32.totalorder %s149, %s152
      %p161 = scmp.eq.s32.totalorder %s22, 1
      %p162 = por %p160, %p161
      %p163 = scmp.ne.s32.totalorder %s152, %s153
      %p164 = scmp.eq.s32.totalorder %s22, 0
      %p165 = por %p163, %p164
      %p166 = scmp.ne.s32.totalorder %s152, %s153
      %p167 = scmp.eq.s32.totalorder %s23, 1
      %p168 = por %p166, %p167
      %p170 = scmp.ne.s32.totalorder %s153, %s169
      %p171 = scmp.eq.s32.totalorder %s23, 0
      %p172 = por %p170, %p171
      %p173 = scmp.le.s32.totalorder 1, %s17
      %p174 = scmp.lt.s32.totalorder %s17, 3
      %p175 = pnand %p173, %p174
      %p176 = pneg %p175
      // Predicated region
      $region9: #{tpu_custom_call.1} parent=5 // pred_check
        _
      $region10: #{tpu_custom_call.1} parent=5 // pred_check_branch
        %178 = sbr.rel (%p175) target = $region12
      $region11: #{tpu_custom_call.1} parent=5 // pred_region
        %s179 = ssub.s32 %s17, 1
      $region12: #{tpu_custom_call.1} parent=5 // pred_fallthru
        _
      %p180 = scmp.lt.s32.totalorder %s17, 2
      // Predicated region
      $region13: #{tpu_custom_call.1} parent=5 // pred_check
        %p181 = pneg %p180
      $region14: #{tpu_custom_call.1} parent=5 // pred_check_branch
        %183 = sbr.rel (%p181) target = $region16
      $region15: #{tpu_custom_call.1} parent=5 // pred_region
        // Predicated region
        $region17: #{tpu_custom_call.1} parent=15 // pred_check
          %p184 = pneg %p51
        $region18: #{tpu_custom_call.1} parent=15 // pred_check_branch
          %186 = sbr.rel (%p184) target = $region20
        $region19: #{tpu_custom_call.1} parent=15 // pred_region
          %s187 = sand.u32 %s41, 1
          %s188 = scalar_lea.sflag [#allocation3], %s187
          %s189 = sand.u32 %s41, 1
          %s190 = smul.addr %s189, 8
          %s191 = scalar_lea.vmem [#allocation2], %s190
          %s192 = smul.u32 2, %s25
          %s194 = ssub.s32 128, 128
          %195 = vsyncadd %s188, %s194
          %s196 = smul.addr %s24, 2
          %s197 = sadd.s32 %s192, %s196
          %s198 = smul.addr %s197, 64
          %s199 = scalar_lea.hbm %s0, %s198
          %s201 = sshll.u32 %s191, 4
          %s202 = int_to_ptr.vmem [resolvable:$true] %s201
          %204 = dma.hbm_to_vmem [thread:$0]  %s199, 128, %s202, %s188
        $region20: #{tpu_custom_call.1} parent=15 // pred_fallthru
          _
        // Predicated region
        $region21: #{tpu_custom_call.1} parent=15 // pred_check
          %p205 = pneg %p79
        $region22: #{tpu_custom_call.1} parent=15 // pred_check_branch
          %207 = sbr.rel (%p205) target = $region24
        $region23: #{tpu_custom_call.1} parent=15 // pred_region
          %s208 = sand.u32 %s17, 1
          %s209 = scalar_lea.sflag [#allocation5], %s208
          %s210 = sand.u32 %s69, 1
          %s211 = smul.addr %s210, 8
          %s212 = scalar_lea.vmem [#allocation4], %s211
          %s213 = smul.u32 2, %s25
          %s215 = ssub.s32 128, 128
          %216 = vsyncadd %s209, %s215
          %s217 = smul.addr %s24, 2
          %s218 = sadd.s32 %s213, %s217
          %s219 = smul.addr %s218, 64
          %s220 = scalar_lea.hbm %s1, %s219
          %s222 = sshll.u32 %s212, 4
          %s223 = int_to_ptr.vmem [resolvable:$true] %s222
          %225 = dma.hbm_to_vmem [thread:$0]  %s220, 128, %s223, %s209
        $region24: #{tpu_custom_call.1} parent=15 // pred_fallthru
          _
        // Predicated region
        $region25: #{tpu_custom_call.1} parent=15 // pred_check
          %p226 = pneg %p107
        $region26: #{tpu_custom_call.1} parent=15 // pred_check_branch
          %228 = sbr.rel (%p226) target = $region28
        $region27: #{tpu_custom_call.1} parent=15 // pred_region
          %s229 = sand.u32 %s17, 1
          %s230 = scalar_lea.sflag [#allocation5], %s229
          %s231 = sand.u32 %s97, 1
          %s232 = smul.addr %s231, 2
          %s233 = scalar_lea.vmem [#allocation6], %s232
          %s234 = smul.u32 2, %s25
          %s236 = ssub.s32 32, 32
          %237 = vsyncadd %s230, %s236
          %s238 = smul.addr %s24, 2
          %s239 = sadd.s32 %s234, %s238
          %s240 = smul.addr %s239, 16
          %s241 = scalar_lea.hbm %s2, %s240
          %s243 = sshll.u32 %s233, 4
          %s244 = int_to_ptr.vmem [resolvable:$true] %s243
          %246 = dma.hbm_to_vmem [thread:$0]  %s241, 32, %s244, %s230
        $region28: #{tpu_custom_call.1} parent=15 // pred_fallthru
          _
      $region16: #{tpu_custom_call.1} parent=5 // pred_fallthru
        _
      %p247 = scmp.le.s32.totalorder 1, %s17
      %p248 = scmp.lt.s32.totalorder %s17, 3
      %p249 = pnand %p247, %p248
      %p250 = pneg %p249
      // Predicated region
      $region29: #{tpu_custom_call.1} parent=5 // pred_check
        _
      $region30: #{tpu_custom_call.1} parent=5 // pred_check_branch
        %252 = sbr.rel (%p249) target = $region32
      $region31: #{tpu_custom_call.1} parent=5 // pred_region
        %s253 = ssub.s32 %s17, 1
        %s254 = sand.u32 %s44, 1
        %s255 = scalar_lea.sflag [#allocation3], %s254
        %s256 = sand.u32 %s44, 1
        %s257 = smul.addr %s256, 8
        %s258 = scalar_lea.vmem [#allocation2], %s257
        // Predicated region
        $region33: #{tpu_custom_call.1} parent=31 // pred_check
          %p259 = pneg %p57
        $region34: #{tpu_custom_call.1} parent=31 // pred_check_branch
          %261 = sbr.rel (%p259) target = $region36
        $region35: #{tpu_custom_call.1} parent=31 // pred_region
          %262 = dma.done %s255, 128
        $region36: #{tpu_custom_call.1} parent=31 // pred_fallthru
          _
        %s263 = sand.u32 %s22, 1
        %s264 = scalar_lea.sflag [#allocation5], %s263
        %s265 = sand.u32 %s72, 1
        %s266 = smul.addr %s265, 8
        %s267 = scalar_lea.vmem [#allocation4], %s266
        // Predicated region
        $region37: #{tpu_custom_call.1} parent=31 // pred_check
          %p268 = pneg %p85
        $region38: #{tpu_custom_call.1} parent=31 // pred_check_branch
          %270 = sbr.rel (%p268) target = $region40
        $region39: #{tpu_custom_call.1} parent=31 // pred_region
          %271 = dma.done %s264, 128
        $region40: #{tpu_custom_call.1} parent=31 // pred_fallthru
          _
        %s272 = sand.u32 %s22, 1
        %s273 = scalar_lea.sflag [#allocation5], %s272
        %s274 = sand.u32 %s100, 1
        %s275 = smul.addr %s274, 2
        %s276 = scalar_lea.vmem [#allocation6], %s275
        // Predicated region
        $region41: #{tpu_custom_call.1} parent=31 // pred_check
          %p277 = pneg %p113
        $region42: #{tpu_custom_call.1} parent=31 // pred_check_branch
          %279 = sbr.rel (%p277) target = $region44
        $region43: #{tpu_custom_call.1} parent=31 // pred_region
          %280 = dma.done %s273, 32
        $region44: #{tpu_custom_call.1} parent=31 // pred_fallthru
          _
        %s281 = sand.u32 %s44, 1
        %s282 = scalar_lea.sflag [#allocation3], %s281
        %s283 = sand.u32 %s44, 1
        %s284 = smul.addr %s283, 8
        %s285 = scalar_lea.vmem [#allocation2], %s284
        %p286 = pneg %p57
        %p287 = pneg %p54
        %s288 = sand.u32 %s22, 1
        %s289 = scalar_lea.sflag [#allocation5], %s288
        %s290 = sand.u32 %s72, 1
        %s291 = smul.addr %s290, 8
        %s292 = scalar_lea.vmem [#allocation4], %s291
        %p293 = pneg %p85
        %p294 = pneg %p82
        %s295 = sand.u32 %s22, 1
        %s296 = scalar_lea.sflag [#allocation5], %s295
        %s297 = sand.u32 %s100, 1
        %s298 = smul.addr %s297, 2
        %s299 = scalar_lea.vmem [#allocation6], %s298
        %p300 = pneg %p113
        %p301 = pneg %p110
        %p302 = pneg %p139
        %p303 = pneg %p136
        %p304 = scmp.lt.s32.totalorder %s26, 1
        %s305 = scalar_select %p304, %s26, 1
        %s306 = smul.addr %s305, 4
        %s307 = scalar_lea.vmem %s3, %s306
        %p308 = pneg %p165
        %p309 = pneg %p162
        %p310 = scmp.lt.s32.totalorder %s26, 1
        %s311 = scalar_select %p310, %s26, 1
        %s312 = smul.addr %s311, 4
        %s313 = scalar_lea.vmem %s4, %s312
        %s314 = smul.u32 2, %s27
        %s315 = smul.u32 2, %s27
        %s316 = smul.u32 2, %s27
        %p317 = scmp.lt.s32.totalorder %s26, 1
        %s318 = scalar_select %p317, %s26, 1
        %s319 = smul.addr %s318, 4
        %s320 = scalar_lea.vmem %s3, %s319
        %p321 = scmp.lt.s32.totalorder %s26, 1
        %s322 = scalar_select %p321, %s26, 1
        %s323 = smul.addr %s322, 4
        %s324 = scalar_lea.vmem %s4, %s323
        %p325 = scmp.eq.s32.totalorder %s27, 0
        // Predicated region
        $region45: #{tpu_custom_call.1} parent=31 // pred_check
          %p326 = pneg %p325
        $region46: #{tpu_custom_call.1} parent=31 // pred_check_branch
          %328 = sbr.rel (%p326) target = $region48
        $region47: #{tpu_custom_call.1} parent=31 // pred_region
          %vm329 = vcmask 3072
          %330 = vst.msk [vmem:[%s320] sm:$0xf] %vm329, 0.0
          %331 = vst.msk [vmem:[%s324] sm:$0xf] %vm329, 0.0
        $region48: #{tpu_custom_call.1} parent=31 // pred_fallthru
          _
        %v332 = vld [vmem:[%s258] sm:$0xff]
        %v333 = vld [vmem:[%s267] sm:$0xff]
        %v334 = vld [vmem:[%s276] sm:$0x3]
        %v336 = vcombine.high %v332, %v332
        %vm338 = vcmask 1043456
        %v339 = vsel %vm338, %v332, -inf
        %v340 = vrot.slane %v339, 4
        %v341 = vmax.f32 %v339, %v340
        %v342 = vrot.slane %v341, 2
        %v343 = vmax.f32 %v341, %v342
        %v344 = vrot.slane %v343, 1
        %v345 = vmax.f32 %v343, %v344
        %v346 = vsel %vm338, %v336, -inf
        %v347 = vrot.slane %v346, 4
        %v348 = vmax.f32 %v346, %v347
        %v349 = vrot.slane %v348, 2
        %v350 = vmax.f32 %v348, %v349
        %v351 = vrot.slane %v350, 1
        %v352 = vmax.f32 %v350, %v351
        %v355 = vcombine.low %v345, %v352
        %v357 = vsub.f32 %v332, %v355
        %v358 = vmul.f32 %v357, 1.442695
        %v359 = vpow.pop %v358
        %v361 = vcombine.high %v359, %v359
        %v363 = vsel %vm338, %v359, 0.0
        %v364 = vrot.slane %v363, 4
        %v365 = vadd.f32 %v363, %v364
        %v366 = vrot.slane %v365, 2
        %v367 = vadd.f32 %v365, %v366
        %v368 = vrot.slane %v367, 1
        %v369 = vadd.f32 %v367, %v368
        %v370 = vsel %vm338, %v361, 0.0
        %v371 = vrot.slane %v370, 4
        %v372 = vadd.f32 %v370, %v371
        %v373 = vrot.slane %v372, 2
        %v374 = vadd.f32 %v372, %v373
        %v375 = vrot.slane %v374, 1
        %v376 = vadd.f32 %v374, %v375
        %v377 = vrcp.pop %v369
        %v378 = vmul.f32 1.0, %v377
        %v379 = vrcp.pop %v376
        %v380 = vmul.f32 1.0, %v379
        %v383 = vcombine.low %v378, %v380
        %v385 = vmul.f32 %v359, %v383
        %v386 = vsub.f32 %v385, %v333
        %v387 = vand.u32 2147483647, %v386
        %v388 = vrsqrt.pop %v387
        %v389 = vmul.f32 %v387, %v388
        %vm390 = vcmp.eq.f32.partialorder %v387, inf
        %v391 = vsel %vm390, %v387, %v389
        %vm392 = vcmp.eq.f32.partialorder %v387, 0.0
        %v393 = vand.u32 %v387, 2147483648
        %v394 = vsel %vm392, %v393, %v391
        %v395 = vmul.f32 %v387, %v394
        %v397 = vlaneseq
        %v398 = vshrl.u32 %v397, 7
        %v399 = vsub.s32 0, %v398
        %v400 = vrot.slane %v334, %v399
        %v401 = vlaneseq
        %v402 = vshrl.u32 %v401, 7
        %v403 = vsub.s32 1, %v402
        %v404 = vrot.slane %v334, %v403
        %v405 = vcombine.low %v400, %v404
        %v407 = vmul.f32 %v395, %v405
        %v408 = vadd.f32 %v385, %v333
        %v409 = vmul.f32 %v408, %v405
        %v410 = vld [vmem:[%s320] sm:$0xf]
        %v412 = vcombine.high %v407, %v407
        %v414 = vsel %vm338, %v407, 0.0
        %v415 = vsel %vm338, %v412, 0.0
        %v416 = vadd.f32 %v414, %v415
        %417 = vadd.xlane.f32.xlu0 %v416
        %v418 = vpop.xlane.xlu0 %417
        %v419 = vadd.f32 %v410, %v418
        %vm420 = vcmask 3072
        %421 = vst.msk [vmem:[%s320] sm:$0xf] %vm420, %v419
        %v422 = vld [vmem:[%s324] sm:$0xf]
        %v424 = vcombine.high %v409, %v409
        %v426 = vsel %vm338, %v409, 0.0
        %v427 = vsel %vm338, %v424, 0.0
        %v428 = vadd.f32 %v426, %v427
        %429 = vadd.xlane.f32.xlu0 %v428
        %v430 = vpop.xlane.xlu0 %429
        %v431 = vadd.f32 %v422, %v430
        %432 = vst.msk [vmem:[%s324] sm:$0xf] %vm420, %v431
        %p433 = scmp.lt.s32.totalorder %s26, 1
        %s434 = scalar_select %p433, %s26, 1
        %s435 = smul.addr %s434, 4
        %s436 = scalar_lea.vmem %s3, %s435
        %p437 = scmp.lt.s32.totalorder %s26, 1
        %s438 = scalar_select %p437, %s26, 1
        %s439 = smul.addr %s438, 4
        %s440 = scalar_lea.vmem %s4, %s439
        // Predicated region
        $region49: #{tpu_custom_call.1} parent=31 // pred_check
          %p441 = pneg %p136
        $region50: #{tpu_custom_call.1} parent=31 // pred_check_branch
          %443 = sbr.rel (%p441) target = $region52
        $region51: #{tpu_custom_call.1} parent=31 // pred_region
          _
        $region52: #{tpu_custom_call.1} parent=31 // pred_fallthru
          _
        // Predicated region
        $region53: #{tpu_custom_call.1} parent=31 // pred_check
          %p444 = pneg %p162
        $region54: #{tpu_custom_call.1} parent=31 // pred_check_branch
          %446 = sbr.rel (%p444) target = $region56
        $region55: #{tpu_custom_call.1} parent=31 // pred_region
          _
        $region56: #{tpu_custom_call.1} parent=31 // pred_fallthru
          _
      $region32: #{tpu_custom_call.1} parent=5 // pred_fallthru
        _
      %p447 = scmp.le.s32.totalorder 2, %s17
      // Predicated region
      $region57: #{tpu_custom_call.1} parent=5 // pred_check
        %p448 = pneg %p447
      $region58: #{tpu_custom_call.1} parent=5 // pred_check_branch
        %450 = sbr.rel (%p448) target = $region60
      $region59: #{tpu_custom_call.1} parent=5 // pred_region
        %s451 = ssub.s32 %s17, 2
        // Predicated region
        $region61: #{tpu_custom_call.1} parent=59 // pred_check
          %p452 = pneg %p142
        $region62: #{tpu_custom_call.1} parent=59 // pred_check_branch
          %454 = sbr.rel (%p452) target = $region64
        $region63: #{tpu_custom_call.1} parent=59 // pred_region
          %p455 = scmp.lt.s32.totalorder %s28, 1
          %s456 = scalar_select %p455, %s28, 1
          %s457 = smul.addr %s456, 4
          %s458 = scalar_lea.vmem %s3, %s457
        $region64: #{tpu_custom_call.1} parent=59 // pred_fallthru
          _
        // Predicated region
        $region65: #{tpu_custom_call.1} parent=59 // pred_check
          %p459 = pneg %p168
        $region66: #{tpu_custom_call.1} parent=59 // pred_check_branch
          %461 = sbr.rel (%p459) target = $region68
        $region67: #{tpu_custom_call.1} parent=59 // pred_region
          %p462 = scmp.lt.s32.totalorder %s28, 1
          %s463 = scalar_select %p462, %s28, 1
          %s464 = smul.addr %s463, 4
          %s465 = scalar_lea.vmem %s4, %s464
        $region68: #{tpu_custom_call.1} parent=59 // pred_fallthru
          _
      $region60: #{tpu_custom_call.1} parent=5 // pred_fallthru
        _
    $region6: #{tpu_custom_call.1} parent=1 // loop_footer
      %s21 = sadd.s32 1, %s17
    $region7: #{tpu_custom_call.1} parent=1 // loop_footer_branch
      %16 = sbr.rel target = $region3
    $region8: #{tpu_custom_call.1} parent=1 // loop_exit
      _
    %466 = vsyncpa [#allocation3], 1
    %s467 = scalar_lea.sflag [#allocation3], 1
    %468 = vsyncpa %s467, 1
    %469 = vsyncpa [#allocation5], 1
    %s470 = scalar_lea.sflag [#allocation5], 1
    %471 = vsyncpa %s470, 1

</llo_original>
